<compile_context>
chip_gen: v5e
topology: v5e:2x2
jax: 0.10.0
libtpu: 0.0.40
codegen_flags: <defaults>
</compile_context>

<pallas_src>
import jax
import jax.numpy as jnp
import numpy as np
from jax.experimental import pallas as pl
from jax.experimental.pallas import tpu as pltpu


def _mean_pool_normalize_kernel(emb_ref, mask_ref, inv_ref, out_ref):
    """One batch tile: masked mean pool over seq + L2 normalize over hidden.

    emb_ref  : (TB, S, H) bf16/f32  token embeddings tile (model_output[0])
    mask_ref : (TB, S)    bf16/f32  attention mask tile (0/1, exact in bf16)
    inv_ref  : (TB, 1)    f32       precomputed 1 / clamp(sum(mask), 1e-9)
    out_ref  : (TB, H)    f32       normalized sentence embeddings tile
    """
    emb = emb_ref[...]                                     # (TB, S, H)

    # Masked sum over seq on the MXU with f32 accumulation.  The rank-3
    # batched-matmul form ('bqs,bsh->bqh', q=1) is the canonical Mosaic
    # lowering pattern; the expand/squeeze relayouts are a few KiB and fully
    # hidden under the emb tile DMA.
    mask3 = mask_ref[...][:, None, :]                      # (TB, 1, S)
    summed = jnp.einsum(
        "bqs,bsh->bqh", mask3, emb,
        preferred_element_type=jnp.float32,
    )[:, 0, :]                                             # (TB, H) f32

    # torch mean_pooling: summed / clamp(count, 1e-9)  (inv precomputed).
    pooled = summed * inv_ref[...]                         # (TB, H) * (TB, 1)

    # F.normalize(p=2, dim=1): x / max(||x||, 1e-12).  Exact sqrt + divide
    # (EUP/VPU work is free filler under the HBM-bound DMA).
    sq_norm = jnp.sum(pooled * pooled, axis=1, keepdims=True)   # (TB, 1)
    norm = jnp.sqrt(jnp.maximum(sq_norm, 1e-24))
    out_ref[...] = (pooled / norm).astype(out_ref.dtype)


def _choose_block_b(B, S, H, emb_itemsize, vmem_limit_bytes):
    """Pick a batch tile: multiple of 8, ~1/3 of scoped VMEM per emb buffer."""
    bytes_per_row = S * H * emb_itemsize
    target = max(vmem_limit_bytes // 3, bytes_per_row)     # per emb buffer
    rows = max(8, (target // bytes_per_row) // 8 * 8)
    # Prefer >= ~4 grid steps when the batch allows it (pipelining + v7x
    # megacore parity) without shrinking tiles below 8 rows.
    quarter = -(-B // 4)                                    # ceil(B / 4)
    cap = max(8, ((quarter + 7) // 8) * 8)
    return int(min(rows, cap))


def sentence_embedding_pallas(token_embeddings, attention_mask, *,
                              block_b=None, vmem_limit_bytes=None):
    """Mean-pooled, L2-normalized sentence embeddings.

    token_embeddings: (B, S, H) bf16/f32 -- stands in for model_output[0]
    attention_mask:   (B, S)    int      -- 1 = real token, 0 = padding
    returns:          (B, H)    float32
    """
    B, S, H = token_embeddings.shape
    emb_dtype = token_embeddings.dtype
    itemsize = jnp.dtype(emb_dtype).itemsize

    # Per-generation VMEM budget: ~3/4 of physical per-TC VMEM, capped 8 MiB
    # below it (48 MiB on v7x's 64 MiB; 96 MiB on v5e/v6e's 128 MiB), well
    # above the 16/32 MiB default scoped limits.
    if vmem_limit_bytes is None:
        try:
            phys_vmem = int(pltpu.get_tpu_info().vmem_capacity_bytes)
        except Exception:
            phys_vmem = 64 << 20        # conservative (v7x per-TC)
        vmem_limit_bytes = max(32 << 20,
                               min(phys_vmem * 3 // 4, phys_vmem - (8 << 20)))
    vmem_limit_bytes = int(vmem_limit_bytes)

    if block_b is None:
        block_b = _choose_block_b(B, S, H, itemsize, vmem_limit_bytes)
    block_b = int(block_b)

    # Pad the batch to a multiple of block_b (and an even number of grid steps
    # for v7x megacore sharding) instead of collapsing the grid to one step.
    n_blocks = pl.cdiv(B, block_b)
    if n_blocks > 1 and n_blocks % 2 == 1:
        n_blocks += 1
    padded_B = n_blocks * block_b

    # Wrapper-side prep: bf16 0/1 mask (exact), precomputed inverse counts.
    mask_f32 = attention_mask.astype(jnp.float32)
    inv_counts = 1.0 / jnp.maximum(
        jnp.sum(mask_f32, axis=1, keepdims=True), 1e-9)         # (B, 1) f32
    mask_cast = attention_mask.astype(emb_dtype)                # (B, S)

    if padded_B != B:
        pad = padded_B - B
        token_embeddings = jnp.pad(token_embeddings, ((0, pad), (0, 0), (0, 0)))
        mask_cast = jnp.pad(mask_cast, ((0, pad), (0, 0)))
        inv_counts = jnp.pad(inv_counts, ((0, pad), (0, 0)))

    grid = (padded_B // block_b,)

    cost = pl.CostEstimate(
        flops=2 * padded_B * S * H,
        transcendentals=padded_B,
        bytes_accessed=padded_B * (S * H * itemsize + S * itemsize + 4 + H * 4),
    )

    out = pl.pallas_call(
        _mean_pool_normalize_kernel,
        out_shape=jax.ShapeDtypeStruct((padded_B, H), jnp.float32),
        grid_spec=pltpu.PrefetchScalarGridSpec(
            num_scalar_prefetch=0,
            grid=grid,
            in_specs=[
                pl.BlockSpec((block_b, S, H), lambda i: (i, 0, 0)),
                pl.BlockSpec((block_b, S), lambda i: (i, 0)),
                pl.BlockSpec((block_b, 1), lambda i: (i, 0)),
            ],
            out_specs=pl.BlockSpec((block_b, H), lambda i: (i, 0)),
        ),
        compiler_params=pltpu.CompilerParams(
            # Batch tiles are independent -> megacore-shard on v7x; harmless
            # on single-TC v5e/v6e.
            dimension_semantics=("parallel",),
            vmem_limit_bytes=vmem_limit_bytes,
        ),
        cost_estimate=cost,
    )(token_embeddings, mask_cast, inv_counts)

    return out[:B]


def _reference(token_embeddings, attention_mask):
    """Pure-JAX reference mirroring the PyTorch mean_pooling + F.normalize."""
    emb = token_embeddings.astype(jnp.float32)
    mask = attention_mask.astype(jnp.float32)[:, :, None]
    summed = jnp.sum(emb * mask, axis=1)
    counts = jnp.maximum(jnp.sum(mask, axis=1), 1e-9)
    pooled = summed / counts
    norm = jnp.maximum(jnp.linalg.norm(pooled, axis=1, keepdims=True), 1e-12)
    return pooled / norm


if __name__ == "__main__":
    # TODO(synk): the MPNet transformer (AutoModel) and the tokenizer have no
    # Pallas equivalent without weights; synthetic bf16 token embeddings stand
    # in for model_output[0].
    B, S, H = 16, 8, 128   # small demo, lane-dense hidden (multiple of 128)

    key = jax.random.PRNGKey(0)
    k_emb, k_len = jax.random.split(key)
    token_embeddings = jax.random.normal(k_emb, (B, S, H), dtype=jnp.float32)
    token_embeddings = token_embeddings.astype(jnp.bfloat16)   # bf16 activations

    # Each sentence uses between 1 and S real tokens; the rest is padding.
    lengths = jax.random.randint(k_len, (B,), 1, S + 1)
    attention_mask = (jnp.arange(S)[None, :] < lengths[:, None]).astype(jnp.int32)

    out = jax.block_until_ready(
        sentence_embedding_pallas(token_embeddings, attention_mask))

    ref = _reference(token_embeddings, attention_mask)
    np.testing.assert_allclose(np.asarray(out), np.asarray(ref),
                               rtol=1e-5, atol=1e-5)

    print("KERNEL_OK")
</pallas_src>

<mosaic_0001>
module attributes {stable_mosaic.version = 11 : i64} {
  func.func @_mean_pool_normalize_kernel(%arg0: i32, %arg1: memref<8x8x128xbf16, #tpu.memory_space<vmem>>, %arg2: memref<8x8xbf16, #tpu.memory_space<vmem>>, %arg3: memref<8x1xf32, #tpu.memory_space<vmem>>, %arg4: memref<8x128xf32, #tpu.memory_space<vmem>>) attributes {dimension_semantics = [#tpu.dimension_semantics<parallel>], iteration_bounds = array<i64: 2>, scalar_prefetch = 0 : i64, scratch_operands = 0 : i64, tpu.core_type = #tpu.core_type<tc>, window_params = [{transform_indices = @transform_0, window_bounds = array<i64: 8, 8, 128>}, {transform_indices = @transform_1, window_bounds = array<i64: 8, 8>}, {transform_indices = @transform_2, window_bounds = array<i64: 8, 1>}, {transform_indices = @transform_3, window_bounds = array<i64: 8, 128>}]} {
    %c0 = arith.constant 0 : index
    %c0_0 = arith.constant 0 : index
    %c0_1 = arith.constant 0 : index
    %0 = vector.load %arg1[%c0, %c0_0, %c0_1] : memref<8x8x128xbf16, #tpu.memory_space<vmem>>, vector<8x8x128xbf16>
    %c0_2 = arith.constant 0 : index
    %c0_3 = arith.constant 0 : index
    %1 = vector.load %arg2[%c0_2, %c0_3] : memref<8x8xbf16, #tpu.memory_space<vmem>>, vector<8x8xbf16>
    %2 = vector.shape_cast %1 : vector<8x8xbf16> to vector<8x1x8xbf16>
    "tpu.trace_start"() <{level = 10 : i32, message = "bqs,bsh->bqh"}> : () -> ()
    %cst = arith.constant dense<0.000000e+00> : vector<8x1x128xf32>
    %3 = tpu.matmul %2, %0, %cst {dimension_numbers = #tpu.dot_dimension_numbers<[2], [1], [1], [2], [0, 0, 0, 1, 1, 2], [0], [0]>} : vector<8x1x8xbf16>, vector<8x8x128xbf16>, vector<8x1x128xf32> -> vector<8x1x128xf32>
    "tpu.trace_stop"() : () -> ()
    %4 = vector.shape_cast %3 : vector<8x1x128xf32> to vector<8x128xf32>
    %c0_4 = arith.constant 0 : index
    %c0_5 = arith.constant 0 : index
    %5 = vector.load %arg3[%c0_4, %c0_5] : memref<8x1xf32, #tpu.memory_space<vmem>>, vector<8x1xf32>
    %6 = vector.broadcast %5 : vector<8x1xf32> to vector<8x128xf32>
    %7 = arith.mulf %4, %6 : vector<8x128xf32>
    %8 = arith.mulf %7, %7 : vector<8x128xf32>
    %cst_6 = arith.constant dense<0.000000e+00> : vector<8xf32>
    %9 = vector.multi_reduction <add>, %8, %cst_6 [1] : vector<8x128xf32> to vector<8xf32>
    %10 = vector.shape_cast %9 : vector<8xf32> to vector<8x1xf32>
    %cst_7 = arith.constant 1.000000e-24 : f32
    %11 = vector.broadcast %cst_7 : f32 to vector<8x1xf32>
    %12 = arith.maximumf %10, %11 : vector<8x1xf32>
    %13 = math.sqrt %12 : vector<8x1xf32>
    %14 = vector.broadcast %13 : vector<8x1xf32> to vector<8x128xf32>
    %15 = arith.divf %7, %14 : vector<8x128xf32>
    %c0_8 = arith.constant 0 : index
    %c0_9 = arith.constant 0 : index
    %16 = vector.load %arg4[%c0_8, %c0_9] : memref<8x128xf32, #tpu.memory_space<vmem>>, vector<8x128xf32>
    tpu.vector_store %arg4[%c0_8, %c0_9], %15 {strides = array<i32>} : memref<8x128xf32, #tpu.memory_space<vmem>>, vector<8x128xf32>,
    return
  }
  func.func @transform_0(%arg0: i32) -> (i32, i32, i32) {
    %c0_i32 = arith.constant 0 : i32
    %c0_i32_0 = arith.constant 0 : i32
    %c0_i32_1 = arith.constant 0 : i32
    return %arg0, %c0_i32, %c0_i32_0 : i32, i32, i32
  }
  func.func @transform_1(%arg0: i32) -> (i32, i32) {
    %c0_i32 = arith.constant 0 : i32
    %c0_i32_0 = arith.constant 0 : i32
    return %arg0, %c0_i32 : i32, i32
  }
  func.func @transform_2(%arg0: i32) -> (i32, i32) {
    %c0_i32 = arith.constant 0 : i32
    %c0_i32_0 = arith.constant 0 : i32
    return %arg0, %c0_i32 : i32, i32
  }
  func.func @transform_3(%arg0: i32) -> (i32, i32) {
    %c0_i32 = arith.constant 0 : i32
    %c0_i32_0 = arith.constant 0 : i32
    return %arg0, %c0_i32 : i32, i32
  }
}

</mosaic_0001>

<llo_original>
// kernel: tpu_custom_call.1
$region0: #{tpu_custom_call.1}
  #allocation0 [shape = 'u32[]', space=smem, size = 0x4, offset = 0x4, fixed_abs, tag = 'smem constant byte address 0x4 - core index']
  #allocation1 [shape = 'u32[72,128]{1,0:T(1,128)}', space=vmem, size = 0x9000, scoped, tag = 'internal scratch']
  %s0 = inlined_call_operand.hbm [shape: bf16[16,8,128], index: 0, kind: input, shape index: {}]
  %s1 = inlined_call_operand.vmem [shape: bf16[16,8], index: 1, kind: input, shape index: {}]
  %s2 = inlined_call_operand.vmem [shape: f32[16,1], index: 2, kind: input, shape index: {}]
  %s3 = inlined_call_operand.hbm [shape: f32[16,128], index: 3, kind: output, shape index: {}]
  %s4 = sld [smem:[#allocation0]]
  $region49: #{tpu_custom_call.1} parent=0
    _
  %s6 = ssub.s32 1, %s4
  %s7 = scalar_select 0, %s6, %s4
  $region1: #{tpu_custom_call.1} parent=0
    #allocation2 [shape = 'u8[32768]{0}', space=vmem, size = 0x8000, scoped, tag = 'input window, operand 0']
    #allocation3 [shape = 's32[2]{0}', space=sflag, size = 0x8, scoped, tag = 'scoped memory for tpu_custom_call.1']
    #allocation4 [shape = 's32[2]{0}', space=sflag, size = 0x8, scoped, tag = 'scoped memory for tpu_custom_call.1']
    #allocation5 [shape = 'u8[8192]{0}', space=vmem, size = 0x2000, scoped, tag = 'output window, operand 0']
    %8 = vsyncpa [#allocation3], 0
    %s9 = scalar_lea.sflag [#allocation3], 1
    %10 = vsyncpa %s9, 0
    %11 = vsyncpa [#allocation4], 0
    %s12 = scalar_lea.sflag [#allocation4], 1
    %13 = vsyncpa %s12, 0
    loop: start=0, step=1, limit=4
    $region2: #{tpu_custom_call.1} parent=1 // loop_pre_header
      _
    $region3: #{tpu_custom_call.1} parent=1 // loop_header
      %s15 = sphi 0, %s19
      %p16 = scmp.ge.s32.totalorder %s15, 4
      %s25 = sphi 0, %s27
      %s28 = sphi 0, %s25
      %s29 = sphi 0, %s28
      %s45 = sphi 0, %s29
      %s51 = sphi 0, %s53
      %s54 = sphi 0, %s51
      %s55 = sphi 0, %s54
      %s71 = sphi 0, %s55
      %s77 = sphi 0, %s79
      %s80 = sphi 0, %s77
      %s81 = sphi 0, %s80
      %s97 = sphi 0, %s81
      %s103 = sphi 0, %s105
      %s106 = sphi 0, %s103
      %s107 = sphi 0, %s106
      %s123 = sphi 0, %s107
    $region4: #{tpu_custom_call.1} parent=1 // loop_header_branch
      %18 = sbr.rel (%p16) target = $region8
    $region5: #{tpu_custom_call.1} parent=1 // loop_body
      %s20 = ssub.s32 %s15, 1
      %s21 = ssub.s32 %s15, 2
      %s22 = sadd.s32 %s15, 1
      %s23 = ssub.s32 %s15, %s22
      %p24 = scmp.eq.s32.totalorder %s23, 0
      %s26 = sadd.s32 %s25, 1
      %s27 = scalar_select %p24, %s25, %s26
      %p30 = pneg %p24
      %p31 = scmp.eq.s32.totalorder %s15, 1
      %p32 = por %p30, %p31
      %p33 = scmp.ne.s32.totalorder %s25, %s28
      %p34 = scmp.eq.s32.totalorder %s15, 0
      %p35 = por %p33, %p34
      %p36 = scmp.ne.s32.totalorder %s25, %s28
      %p37 = scmp.eq.s32.totalorder %s20, 1
      %p38 = por %p36, %p37
      %p39 = scmp.ne.s32.totalorder %s28, %s29
      %p40 = scmp.eq.s32.totalorder %s20, 0
      %p41 = por %p39, %p40
      %p42 = scmp.ne.s32.totalorder %s28, %s29
      %p43 = scmp.eq.s32.totalorder %s21, 1
      %p44 = por %p42, %p43
      %p46 = scmp.ne.s32.totalorder %s29, %s45
      %p47 = scmp.eq.s32.totalorder %s21, 0
      %p48 = por %p46, %p47
      %s49 = ssub.s32 %s15, %s22
      %p50 = scmp.eq.s32.totalorder %s49, 0
      %s52 = sadd.s32 %s51, 1
      %s53 = scalar_select %p50, %s51, %s52
      %p56 = pneg %p50
      %p57 = scmp.eq.s32.totalorder %s15, 1
      %p58 = por %p56, %p57
      %p59 = scmp.ne.s32.totalorder %s51, %s54
      %p60 = scmp.eq.s32.totalorder %s15, 0
      %p61 = por %p59, %p60
      %p62 = scmp.ne.s32.totalorder %s51, %s54
      %p63 = scmp.eq.s32.totalorder %s20, 1
      %p64 = por %p62, %p63
      %p65 = scmp.ne.s32.totalorder %s54, %s55
      %p66 = scmp.eq.s32.totalorder %s20, 0
      %p67 = por %p65, %p66
      %p68 = scmp.ne.s32.totalorder %s54, %s55
      %p69 = scmp.eq.s32.totalorder %s21, 1
      %p70 = por %p68, %p69
      %p72 = scmp.ne.s32.totalorder %s55, %s71
      %p73 = scmp.eq.s32.totalorder %s21, 0
      %p74 = por %p72, %p73
      %s75 = ssub.s32 %s15, %s22
      %p76 = scmp.eq.s32.totalorder %s75, 0
      %s78 = sadd.s32 %s77, 1
      %s79 = scalar_select %p76, %s77, %s78
      %p82 = pneg %p76
      %p83 = scmp.eq.s32.totalorder %s15, 1
      %p84 = por %p82, %p83
      %p85 = scmp.ne.s32.totalorder %s77, %s80
      %p86 = scmp.eq.s32.totalorder %s15, 0
      %p87 = por %p85, %p86
      %p88 = scmp.ne.s32.totalorder %s77, %s80
      %p89 = scmp.eq.s32.totalorder %s20, 1
      %p90 = por %p88, %p89
      %p91 = scmp.ne.s32.totalorder %s80, %s81
      %p92 = scmp.eq.s32.totalorder %s20, 0
      %p93 = por %p91, %p92
      %p94 = scmp.ne.s32.totalorder %s80, %s81
      %p95 = scmp.eq.s32.totalorder %s21, 1
      %p96 = por %p94, %p95
      %p98 = scmp.ne.s32.totalorder %s81, %s97
      %p99 = scmp.eq.s32.totalorder %s21, 0
      %p100 = por %p98, %p99
      %s101 = ssub.s32 %s15, %s22
      %p102 = scmp.eq.s32.totalorder %s101, 0
      %s104 = sadd.s32 %s103, 1
      %s105 = scalar_select %p102, %s103, %s104
      %p108 = pneg %p102
      %p109 = scmp.eq.s32.totalorder %s15, 1
      %p110 = por %p108, %p109
      %p111 = scmp.ne.s32.totalorder %s103, %s106
      %p112 = scmp.eq.s32.totalorder %s15, 0
      %p113 = por %p111, %p112
      %p114 = scmp.ne.s32.totalorder %s103, %s106
      %p115 = scmp.eq.s32.totalorder %s20, 1
      %p116 = por %p114, %p115
      %p117 = scmp.ne.s32.totalorder %s106, %s107
      %p118 = scmp.eq.s32.totalorder %s20, 0
      %p119 = por %p117, %p118
      %p120 = scmp.ne.s32.totalorder %s106, %s107
      %p121 = scmp.eq.s32.totalorder %s21, 1
      %p122 = por %p120, %p121
      %p124 = scmp.ne.s32.totalorder %s107, %s123
      %p125 = scmp.eq.s32.totalorder %s21, 0
      %p126 = por %p124, %p125
      %p127 = scmp.le.s32.totalorder 1, %s15
      %p128 = scmp.lt.s32.totalorder %s15, 3
      %p129 = pnand %p127, %p128
      %p130 = pneg %p129
      // Predicated region
      $region9: #{tpu_custom_call.1} parent=5 // pred_check
        _
      $region10: #{tpu_custom_call.1} parent=5 // pred_check_branch
        %132 = sbr.rel (%p129) target = $region12
      $region11: #{tpu_custom_call.1} parent=5 // pred_region
        %s133 = ssub.s32 %s15, 1
      $region12: #{tpu_custom_call.1} parent=5 // pred_fallthru
        _
      %p134 = scmp.lt.s32.totalorder %s15, 2
      // Predicated region
      $region13: #{tpu_custom_call.1} parent=5 // pred_check
        %p135 = pneg %p134
      $region14: #{tpu_custom_call.1} parent=5 // pred_check_branch
        %137 = sbr.rel (%p135) target = $region16
      $region15: #{tpu_custom_call.1} parent=5 // pred_region
        // Predicated region
        $region17: #{tpu_custom_call.1} parent=15 // pred_check
          %p138 = pneg %p35
        $region18: #{tpu_custom_call.1} parent=15 // pred_check_branch
          %140 = sbr.rel (%p138) target = $region20
        $region19: #{tpu_custom_call.1} parent=15 // pred_region
          %s141 = sand.u32 %s25, 1
          %s142 = scalar_lea.sflag [#allocation3], %s141
          %s143 = sand.u32 %s25, 1
          %s144 = smul.addr %s143, 32
          %s145 = scalar_lea.vmem [#allocation2], %s144
          %s146 = smul.u32 8, %s15
          %148 = vsyncadd %s142, 0
          %s149 = smul.addr %s146, 4
          %s150 = scalar_lea.hbm %s0, %s149
          %s151 = sshll.u32 %s150, 4
          %s152 = int_to_ptr.hbm [resolvable:$true] %s151
          %s153 = sshll.u32 %s145, 4
          %s154 = int_to_ptr.vmem [resolvable:$true] %s153
          %159 = dma.hbm_to_vmem [thread:$0]  %s152, 512, %s154, %s142, 64, 64, 4
        $region20: #{tpu_custom_call.1} parent=15 // pred_fallthru
          _
        // Predicated region
        $region21: #{tpu_custom_call.1} parent=15 // pred_check
          %p160 = pneg %p61
        $region22: #{tpu_custom_call.1} parent=15 // pred_check_branch
          %162 = sbr.rel (%p160) target = $region24
        $region23: #{tpu_custom_call.1} parent=15 // pred_region
          %p163 = scmp.lt.s32.totalorder %s15, 1
          %s164 = scalar_select %p163, %s15, 1
          %s165 = smul.addr %s164, 4
          %s166 = scalar_lea.vmem %s1, %s165
        $region24: #{tpu_custom_call.1} parent=15 // pred_fallthru
          _
        // Predicated region
        $region25: #{tpu_custom_call.1} parent=15 // pred_check
          %p167 = pneg %p87
        $region26: #{tpu_custom_call.1} parent=15 // pred_check_branch
          %169 = sbr.rel (%p167) target = $region28
        $region27: #{tpu_custom_call.1} parent=15 // pred_region
          %p170 = scmp.lt.s32.totalorder %s15, 1
          %s171 = scalar_select %p170, %s15, 1
          %s172 = smul.addr %s171, 8
          %s173 = scalar_lea.vmem %s2, %s172
        $region28: #{tpu_custom_call.1} parent=15 // pred_fallthru
          _
      $region16: #{tpu_custom_call.1} parent=5 // pred_fallthru
        _
      %p174 = scmp.le.s32.totalorder 1, %s15
      %p175 = scmp.lt.s32.totalorder %s15, 3
      %p176 = pnand %p174, %p175
      %p177 = pneg %p176
      // Predicated region
      $region29: #{tpu_custom_call.1} parent=5 // pred_check
        _
      $region30: #{tpu_custom_call.1} parent=5 // pred_check_branch
        %179 = sbr.rel (%p176) target = $region32
      $region31: #{tpu_custom_call.1} parent=5 // pred_region
        %s180 = ssub.s32 %s15, 1
        %s181 = sand.u32 %s28, 1
        %s182 = scalar_lea.sflag [#allocation3], %s181
        %s183 = sand.u32 %s28, 1
        %s184 = smul.addr %s183, 32
        %s185 = scalar_lea.vmem [#allocation2], %s184
        // Predicated region
        $region33: #{tpu_custom_call.1} parent=31 // pred_check
          %p186 = pneg %p41
        $region34: #{tpu_custom_call.1} parent=31 // pred_check_branch
          %188 = sbr.rel (%p186) target = $region36
        $region35: #{tpu_custom_call.1} parent=31 // pred_region
          %190 = dma.done %s182, 512
        $region36: #{tpu_custom_call.1} parent=31 // pred_fallthru
          _
        %s191 = sand.u32 %s28, 1
        %s192 = scalar_lea.sflag [#allocation3], %s191
        %s193 = sand.u32 %s28, 1
        %s194 = smul.addr %s193, 32
        %s195 = scalar_lea.vmem [#allocation2], %s194
        %p196 = pneg %p41
        %p197 = pneg %p38
        %p198 = scmp.lt.s32.totalorder %s20, 1
        %s199 = scalar_select %p198, %s20, 1
        %s200 = smul.addr %s199, 4
        %s201 = scalar_lea.vmem %s1, %s200
        %p202 = pneg %p67
        %p203 = pneg %p64
        %p204 = scmp.lt.s32.totalorder %s20, 1
        %s205 = scalar_select %p204, %s20, 1
        %s206 = smul.addr %s205, 8
        %s207 = scalar_lea.vmem %s2, %s206
        %p208 = pneg %p93
        %p209 = pneg %p90
        %p210 = pneg %p119
        %p211 = pneg %p116
        %s212 = sand.u32 %s106, 1
        %s213 = scalar_lea.sflag [#allocation4], %s212
        %s214 = sand.u32 %s106, 1
        %s215 = smul.addr %s214, 8
        %s216 = scalar_lea.vmem [#allocation5], %s215
        %s217 = smul.u32 8, %s20
        %p218 = scmp.lt.s32.totalorder %s20, 1
        %s219 = scalar_select %p218, %s20, 1
        %s220 = smul.addr %s219, 4
        %s221 = scalar_lea.vmem %s1, %s220
        %p222 = scmp.lt.s32.totalorder %s20, 1
        %s223 = scalar_select %p222, %s20, 1
        %s224 = smul.addr %s223, 8
        %s225 = scalar_lea.vmem %s2, %s224
        %v227 = vld [vmem:[%s185] sm:$0xf]
        %v228 = vld [vmem:[%s185 + $0x4] sm:$0xf]
        %v229 = vld [vmem:[%s185 + $0x8] sm:$0xf]
        %v230 = vld [vmem:[%s185 + $0xc] sm:$0xf]
        %v231 = vld [vmem:[%s185 + $0x10] sm:$0xf]
        %v232 = vld [vmem:[%s185 + $0x14] sm:$0xf]
        %v233 = vld [vmem:[%s185 + $0x18] sm:$0xf]
        %v234 = vld [vmem:[%s185 + $0x1c] sm:$0xf]
        %v235 = vld [vmem:[%s221] sm:$0xf]
        %v237 = vrot.slane %v235, 3
        %vm238 = vcmask 1040384
        %v241 = vsel %vm238, %v235, %v237
        %vm243 = vcmask 1041409
        %v244 = vsel %vm243, %v235, %v237
        %v246 = vrot.slane %v244, 1
        %vm247 = vcmask 1042434
        %v248 = vsel %vm247, %v235, %v237
        %v250 = vrot.slane %v248, 2
        %vm251 = vcmask 1043459
        %v252 = vsel %vm251, %v235, %v237
        %v254 = vrot.slane %v252, 3
        %v255 = vunpack.i.l.s16 %v241
        %v256 = vunpack.i.h.s16 %v241
        %v257 = vunpack.i.l.s16 %v246
        %v258 = vunpack.i.h.s16 %v246
        %v259 = vunpack.i.l.s16 %v250
        %v260 = vunpack.i.h.s16 %v250
        %v261 = vunpack.i.l.s16 %v254
        %v262 = vunpack.i.h.s16 %v254
        %v263 = vpack.i.b16 %v255, %v255
        %v264 = vperm.slane %v263, 0
        %vm265 = vcmask 64512
        %v267 = vsel %vm265, %v264, 0
        %vm269 = vcmask 1043456
        %v271 = vsel %vm269, %v227, 0
        %273 = vmatpush.bf16.msra.mxu0 0
        %274 = vmatpush.bf16.msra.mxu0 0
        %275 = vmatpush.bf16.msra.mxu0 0
        %276 = vmatpush.bf16.msra.mxu0 0
        %277 = vmatpush.bf16.msra.mxu0 0
        %278 = vmatpush.bf16.msra.mxu0 0
        %279 = vmatpush.bf16.msra.mxu0 0
        %280 = vmatpush.bf16.msra.mxu0 %v271
        %281 = vmatmul.bf16.gmra.mxu0 %v267
        %v282 = vpop.f32.mrf.mxu0
        %v283 = vadd.f32 0.0, %v282
        %v284 = vpop.f32.mrf.mxu0
        %285 = vdwg.mxu0
        %v286 = vpack.i.b16 %v256, %v256
        %v287 = vperm.slane %v286, 0
        %v289 = vsel %vm265, %v287, 0
        %v292 = vsel %vm269, %v228, 0
        %294 = vmatpush.bf16.msra.mxu0 0
        %295 = vmatpush.bf16.msra.mxu0 0
        %296 = vmatpush.bf16.msra.mxu0 0
        %297 = vmatpush.bf16.msra.mxu0 0
        %298 = vmatpush.bf16.msra.mxu0 0
        %299 = vmatpush.bf16.msra.mxu0 0
        %300 = vmatpush.bf16.msra.mxu0 0
        %301 = vmatpush.bf16.msra.mxu0 %v292
        %302 = vmatmul.bf16.gmra.mxu0 %v289
        %v303 = vpop.f32.mrf.mxu0
        %v304 = vadd.f32 0.0, %v303
        %v305 = vpop.f32.mrf.mxu0
        %306 = vdwg.mxu0
        %v307 = vpack.i.b16 %v257, %v257
        %v308 = vperm.slane %v307, 0
        %v310 = vsel %vm265, %v308, 0
        %v313 = vsel %vm269, %v229, 0
        %315 = vmatpush.bf16.msra.mxu0 0
        %316 = vmatpush.bf16.msra.mxu0 0
        %317 = vmatpush.bf16.msra.mxu0 0
        %318 = vmatpush.bf16.msra.mxu0 0
        %319 = vmatpush.bf16.msra.mxu0 0
        %320 = vmatpush.bf16.msra.mxu0 0
        %321 = vmatpush.bf16.msra.mxu0 0
        %322 = vmatpush.bf16.msra.mxu0 %v313
        %323 = vmatmul.bf16.gmra.mxu0 %v310
        %v324 = vpop.f32.mrf.mxu0
        %v325 = vadd.f32 0.0, %v324
        %v326 = vpop.f32.mrf.mxu0
        %327 = vdwg.mxu0
        %v328 = vpack.i.b16 %v258, %v258
        %v329 = vperm.slane %v328, 0
        %v331 = vsel %vm265, %v329, 0
        %v334 = vsel %vm269, %v230, 0
        %336 = vmatpush.bf16.msra.mxu0 0
        %337 = vmatpush.bf16.msra.mxu0 0
        %338 = vmatpush.bf16.msra.mxu0 0
        %339 = vmatpush.bf16.msra.mxu0 0
        %340 = vmatpush.bf16.msra.mxu0 0
        %341 = vmatpush.bf16.msra.mxu0 0
        %342 = vmatpush.bf16.msra.mxu0 0
        %343 = vmatpush.bf16.msra.mxu0 %v334
        %344 = vmatmul.bf16.gmra.mxu0 %v331
        %v345 = vpop.f32.mrf.mxu0
        %v346 = vadd.f32 0.0, %v345
        %v347 = vpop.f32.mrf.mxu0
        %348 = vdwg.mxu0
        %v349 = vpack.i.b16 %v259, %v259
        %v350 = vperm.slane %v349, 0
        %v352 = vsel %vm265, %v350, 0
        %v355 = vsel %vm269, %v231, 0
        %357 = vmatpush.bf16.msra.mxu0 0
        %358 = vmatpush.bf16.msra.mxu0 0
        %359 = vmatpush.bf16.msra.mxu0 0
        %360 = vmatpush.bf16.msra.mxu0 0
        %361 = vmatpush.bf16.msra.mxu0 0
        %362 = vmatpush.bf16.msra.mxu0 0
        %363 = vmatpush.bf16.msra.mxu0 0
        %364 = vmatpush.bf16.msra.mxu0 %v355
        %365 = vmatmul.bf16.gmra.mxu0 %v352
        %v366 = vpop.f32.mrf.mxu0
        %v367 = vadd.f32 0.0, %v366
        %v368 = vpop.f32.mrf.mxu0
        %369 = vdwg.mxu0
        %v370 = vpack.i.b16 %v260, %v260
        %v371 = vperm.slane %v370, 0
        %v373 = vsel %vm265, %v371, 0
        %v376 = vsel %vm269, %v232, 0
        %378 = vmatpush.bf16.msra.mxu0 0
        %379 = vmatpush.bf16.msra.mxu0 0
        %380 = vmatpush.bf16.msra.mxu0 0
        %381 = vmatpush.bf16.msra.mxu0 0
        %382 = vmatpush.bf16.msra.mxu0 0
        %383 = vmatpush.bf16.msra.mxu0 0
        %384 = vmatpush.bf16.msra.mxu0 0
        %385 = vmatpush.bf16.msra.mxu0 %v376
        %386 = vmatmul.bf16.gmra.mxu0 %v373
        %v387 = vpop.f32.mrf.mxu0
        %v388 = vadd.f32 0.0, %v387
        %v389 = vpop.f32.mrf.mxu0
        %390 = vdwg.mxu0
        %v391 = vpack.i.b16 %v261, %v261
        %v392 = vperm.slane %v391, 0
        %v394 = vsel %vm265, %v392, 0
        %v397 = vsel %vm269, %v233, 0
        %399 = vmatpush.bf16.msra.mxu0 0
        %400 = vmatpush.bf16.msra.mxu0 0
        %401 = vmatpush.bf16.msra.mxu0 0
        %402 = vmatpush.bf16.msra.mxu0 0
        %403 = vmatpush.bf16.msra.mxu0 0
        %404 = vmatpush.bf16.msra.mxu0 0
        %405 = vmatpush.bf16.msra.mxu0 0
        %406 = vmatpush.bf16.msra.mxu0 %v397
        %407 = vmatmul.bf16.gmra.mxu0 %v394
        %v408 = vpop.f32.mrf.mxu0
        %v409 = vadd.f32 0.0, %v408
        %v410 = vpop.f32.mrf.mxu0
        %411 = vdwg.mxu0
        %v412 = vpack.i.b16 %v262, %v262
        %v413 = vperm.slane %v412, 0
        %v415 = vsel %vm265, %v413, 0
        %v418 = vsel %vm269, %v234, 0
        %420 = vmatpush.bf16.msra.mxu0 0
        %421 = vmatpush.bf16.msra.mxu0 0
        %422 = vmatpush.bf16.msra.mxu0 0
        %423 = vmatpush.bf16.msra.mxu0 0
        %424 = vmatpush.bf16.msra.mxu0 0
        %425 = vmatpush.bf16.msra.mxu0 0
        %426 = vmatpush.bf16.msra.mxu0 0
        %427 = vmatpush.bf16.msra.mxu0 %v418
        %428 = vmatmul.bf16.gmra.mxu0 %v415
        %v429 = vpop.f32.mrf.mxu0
        %v430 = vadd.f32 0.0, %v429
        %v431 = vpop.f32.mrf.mxu0
        %432 = vdwg.mxu0
        %v433 = vld [vmem:[%s225] sm:$0xff]
        %435 = vset.pattern.permute.xlu0 0
        %436 = vperm.xlu0 %435, %v433
        %v437 = vpop.permute.xlu0 %436
        %v438 = vrot.slane %v437, 1
        %v439 = vrot.slane %v437, 2
        %v440 = vrot.slane %v437, 3
        %v441 = vrot.slane %v437, 4
        %v442 = vrot.slane %v437, 5
        %v443 = vrot.slane %v437, 6
        %v444 = vrot.slane %v437, 7
        %v453 = vmul.f32 %v283, %v437
        %v454 = vmul.f32 %v304, %v438
        %v455 = vmul.f32 %v325, %v439
        %v456 = vmul.f32 %v346, %v440
        %v457 = vmul.f32 %v367, %v441
        %v458 = vmul.f32 %v388, %v442
        %v459 = vmul.f32 %v409, %v443
        %v460 = vmul.f32 %v430, %v444
        %v461 = vmul.f32 %v453, %v453
        %v462 = vmul.f32 %v454, %v454
        %v463 = vmul.f32 %v455, %v455
        %v464 = vmul.f32 %v456, %v456
        %v465 = vmul.f32 %v457, %v457
        %v466 = vmul.f32 %v458, %v458
        %v467 = vmul.f32 %v459, %v459
        %v468 = vmul.f32 %v460, %v460
        %v477 = vrot.slane %v462, 7
        %v478 = vsel %vm243, %v477, %v461
        %v479 = vrot.slane %v463, 6
        %v480 = vsel %vm247, %v479, %v478
        %v481 = vrot.slane %v464, 5
        %v482 = vsel %vm251, %v481, %v480
        %v483 = vrot.slane %v465, 4
        %vm484 = vcmask 1044484
        %v485 = vsel %vm484, %v483, %v482
        %v486 = vrot.slane %v466, 3
        %vm487 = vcmask 1045509
        %v488 = vsel %vm487, %v486, %v485
        %v489 = vrot.slane %v467, 2
        %vm490 = vcmask 1046534
        %v491 = vsel %vm490, %v489, %v488
        %v492 = vrot.slane %v468, 1
        %vm493 = vcmask 1047559
        %v494 = vsel %vm493, %v492, %v491
        %496 = vadd.xlane.f32.xlu0 %v494
        %v497 = vpop.xlane.xlu0 %496
        %v498 = vmax.f32 %v497, 1e-24
        %v499 = vrsqrt.pop %v498
        %v500 = vmul.f32 %v499, %v498
        %v501 = vmul.f32 %v500, %v499
        %v502 = vmul.f32 0.5, %v501
        %v503 = vsub.f32 1.5, %v502
        %v504 = vmul.f32 %v499, %v503
        %v505 = vmul.f32 %v498, %v504
        %vm506 = vcmp.eq.f32.partialorder %v498, inf
        %v507 = vsel %vm506, %v498, %v505
        %vm508 = vcmp.eq.f32.partialorder %v498, 0.0
        %v509 = vand.u32 %v498, 2147483648
        %v510 = vsel %vm508, %v509, %v507
        %v512 = vrot.slane %v510, 1
        %v513 = vrot.slane %v510, 2
        %v514 = vrot.slane %v510, 3
        %v515 = vrot.slane %v510, 4
        %v516 = vrot.slane %v510, 5
        %v517 = vrot.slane %v510, 6
        %v518 = vrot.slane %v510, 7
        %v527 = vrcp.pop %v510
        %v528 = vmul.f32 %v510, %v527
        %v529 = vsub.f32 1.0, %v528
        %v530 = vmul.f32 %v527, %v529
        %v531 = vadd.f32 %v527, %v530
        %vm532 = vweird.f32 %v510
        %vm533 = vweird.f32 %v527
        %vm534 = vmor %vm532, %vm533
        %v535 = vsel %vm534, %v527, %v531
        %v536 = vand.u32 2147483647, %v510
        %vm537 = vcmp.eq.f32.partialorder %v536, 8.507059e+37
        %v538 = vand.u32 %v510, 2147483648
        %v539 = vor.u32 1.1754944e-38, %v538
        %v540 = vsel %vm537, %v539, %v535
        %v541 = vmul.f32 %v453, %v540
        %v542 = vrcp.pop %v512
        %v543 = vmul.f32 %v512, %v542
        %v544 = vsub.f32 1.0, %v543
        %v545 = vmul.f32 %v542, %v544
        %v546 = vadd.f32 %v542, %v545
        %vm547 = vweird.f32 %v512
        %vm548 = vweird.f32 %v542
        %vm549 = vmor %vm547, %vm548
        %v550 = vsel %vm549, %v542, %v546
        %v551 = vand.u32 2147483647, %v512
        %vm552 = vcmp.eq.f32.partialorder %v551, 8.507059e+37
        %v553 = vand.u32 %v512, 2147483648
        %v554 = vor.u32 1.1754944e-38, %v553
        %v555 = vsel %vm552, %v554, %v550
        %v556 = vmul.f32 %v454, %v555
        %v557 = vrcp.pop %v513
        %v558 = vmul.f32 %v513, %v557
        %v559 = vsub.f32 1.0, %v558
        %v560 = vmul.f32 %v557, %v559
        %v561 = vadd.f32 %v557, %v560
        %vm562 = vweird.f32 %v513
        %vm563 = vweird.f32 %v557
        %vm564 = vmor %vm562, %vm563
        %v565 = vsel %vm564, %v557, %v561
        %v566 = vand.u32 2147483647, %v513
        %vm567 = vcmp.eq.f32.partialorder %v566, 8.507059e+37
        %v568 = vand.u32 %v513, 2147483648
        %v569 = vor.u32 1.1754944e-38, %v568
        %v570 = vsel %vm567, %v569, %v565
        %v571 = vmul.f32 %v455, %v570
        %v572 = vrcp.pop %v514
        %v573 = vmul.f32 %v514, %v572
        %v574 = vsub.f32 1.0, %v573
        %v575 = vmul.f32 %v572, %v574
        %v576 = vadd.f32 %v572, %v575
        %vm577 = vweird.f32 %v514
        %vm578 = vweird.f32 %v572
        %vm579 = vmor %vm577, %vm578
        %v580 = vsel %vm579, %v572, %v576
        %v581 = vand.u32 2147483647, %v514
        %vm582 = vcmp.eq.f32.partialorder %v581, 8.507059e+37
        %v583 = vand.u32 %v514, 2147483648
        %v584 = vor.u32 1.1754944e-38, %v583
        %v585 = vsel %vm582, %v584, %v580
        %v586 = vmul.f32 %v456, %v585
        %v587 = vrcp.pop %v515
        %v588 = vmul.f32 %v515, %v587
        %v589 = vsub.f32 1.0, %v588
        %v590 = vmul.f32 %v587, %v589
        %v591 = vadd.f32 %v587, %v590
        %vm592 = vweird.f32 %v515
        %vm593 = vweird.f32 %v587
        %vm594 = vmor %vm592, %vm593
        %v595 = vsel %vm594, %v587, %v591
        %v596 = vand.u32 2147483647, %v515
        %vm597 = vcmp.eq.f32.partialorder %v596, 8.507059e+37
        %v598 = vand.u32 %v515, 2147483648
        %v599 = vor.u32 1.1754944e-38, %v598
        %v600 = vsel %vm597, %v599, %v595
        %v601 = vmul.f32 %v457, %v600
        %v602 = vrcp.pop %v516
        %v603 = vmul.f32 %v516, %v602
        %v604 = vsub.f32 1.0, %v603
        %v605 = vmul.f32 %v602, %v604
        %v606 = vadd.f32 %v602, %v605
        %vm607 = vweird.f32 %v516
        %vm608 = vweird.f32 %v602
        %vm609 = vmor %vm607, %vm608
        %v610 = vsel %vm609, %v602, %v606
        %v611 = vand.u32 2147483647, %v516
        %vm612 = vcmp.eq.f32.partialorder %v611, 8.507059e+37
        %v613 = vand.u32 %v516, 2147483648
        %v614 = vor.u32 1.1754944e-38, %v613
        %v615 = vsel %vm612, %v614, %v610
        %v616 = vmul.f32 %v458, %v615
        %v617 = vrcp.pop %v517
        %v618 = vmul.f32 %v517, %v617
        %v619 = vsub.f32 1.0, %v618
        %v620 = vmul.f32 %v617, %v619
        %v621 = vadd.f32 %v617, %v620
        %vm622 = vweird.f32 %v517
        %vm623 = vweird.f32 %v617
        %vm624 = vmor %vm622, %vm623
        %v625 = vsel %vm624, %v617, %v621
        %v626 = vand.u32 2147483647, %v517
        %vm627 = vcmp.eq.f32.partialorder %v626, 8.507059e+37
        %v628 = vand.u32 %v517, 2147483648
        %v629 = vor.u32 1.1754944e-38, %v628
        %v630 = vsel %vm627, %v629, %v625
        %v631 = vmul.f32 %v459, %v630
        %v632 = vrcp.pop %v518
        %v633 = vmul.f32 %v518, %v632
        %v634 = vsub.f32 1.0, %v633
        %v635 = vmul.f32 %v632, %v634
        %v636 = vadd.f32 %v632, %v635
        %vm637 = vweird.f32 %v518
        %vm638 = vweird.f32 %v632
        %vm639 = vmor %vm637, %vm638
        %v640 = vsel %vm639, %v632, %v636
        %v641 = vand.u32 2147483647, %v518
        %vm642 = vcmp.eq.f32.partialorder %v641, 8.507059e+37
        %v643 = vand.u32 %v518, 2147483648
        %v644 = vor.u32 1.1754944e-38, %v643
        %v645 = vsel %vm642, %v644, %v640
        %v646 = vmul.f32 %v460, %v645
        %v655 = vrot.slane %v556, 7
        %v656 = vsel %vm243, %v655, %v541
        %v657 = vrot.slane %v571, 6
        %v658 = vsel %vm247, %v657, %v656
        %v659 = vrot.slane %v586, 5
        %v660 = vsel %vm251, %v659, %v658
        %v661 = vrot.slane %v601, 4
        %v662 = vsel %vm484, %v661, %v660
        %v663 = vrot.slane %v616, 3
        %v664 = vsel %vm487, %v663, %v662
        %v665 = vrot.slane %v631, 2
        %v666 = vsel %vm490, %v665, %v664
        %v667 = vrot.slane %v646, 1
        %v668 = vsel %vm493, %v667, %v666
        %670 = vst [vmem:[%s216] sm:$0xff] %v668
        %s671 = sand.u32 %s106, 1
        %s672 = scalar_lea.sflag [#allocation4], %s671
        %s673 = sand.u32 %s106, 1
        %s674 = smul.addr %s673, 8
        %s675 = scalar_lea.vmem [#allocation5], %s674
        // Predicated region
        $region37: #{tpu_custom_call.1} parent=31 // pred_check
          %p676 = pneg %p116
        $region38: #{tpu_custom_call.1} parent=31 // pred_check_branch
          %678 = sbr.rel (%p676) target = $region40
        $region39: #{tpu_custom_call.1} parent=31 // pred_region
          %680 = vsyncadd %s672, 0
          %s681 = smul.addr %s20, 8
          %s682 = scalar_lea.hbm %s3, %s681
          %s684 = sshll.u32 %s675, 4
          %s685 = int_to_ptr.vmem [resolvable:$true] %s684
          %s686 = sshll.u32 %s682, 4
          %s687 = int_to_ptr.hbm [resolvable:$true] %s686
          %689 = dma.vmem_to_hbm [thread:$0]  %s685, 128, %s687, %s672
        $region40: #{tpu_custom_call.1} parent=31 // pred_fallthru
          _
      $region32: #{tpu_custom_call.1} parent=5 // pred_fallthru
        _
      %p690 = scmp.le.s32.totalorder 2, %s15
      // Predicated region
      $region41: #{tpu_custom_call.1} parent=5 // pred_check
        %p691 = pneg %p690
      $region42: #{tpu_custom_call.1} parent=5 // pred_check_branch
        %693 = sbr.rel (%p691) target = $region44
      $region43: #{tpu_custom_call.1} parent=5 // pred_region
        %s694 = ssub.s32 %s15, 2
        // Predicated region
        $region45: #{tpu_custom_call.1} parent=43 // pred_check
          %p695 = pneg %p122
        $region46: #{tpu_custom_call.1} parent=43 // pred_check_branch
          %697 = sbr.rel (%p695) target = $region48
        $region47: #{tpu_custom_call.1} parent=43 // pred_region
          %s698 = sand.u32 %s107, 1
          %s699 = scalar_lea.sflag [#allocation4], %s698
          %s700 = sand.u32 %s107, 1
          %s701 = smul.addr %s700, 8
          %s702 = scalar_lea.vmem [#allocation5], %s701
          %704 = dma.done %s699, 128
        $region48: #{tpu_custom_call.1} parent=43 // pred_fallthru
          _
      $region44: #{tpu_custom_call.1} parent=5 // pred_fallthru
        _
    $region6: #{tpu_custom_call.1} parent=1 // loop_footer
      %s19 = sadd.s32 1, %s15
    $region7: #{tpu_custom_call.1} parent=1 // loop_footer_branch
      %14 = sbr.rel target = $region3
    $region8: #{tpu_custom_call.1} parent=1 // loop_exit
      _
    %705 = vsyncpa [#allocation3], 1
    %s706 = scalar_lea.sflag [#allocation3], 1
    %707 = vsyncpa %s706, 1
    %708 = vsyncpa [#allocation4], 1
    %s709 = scalar_lea.sflag [#allocation4], 1
    %710 = vsyncpa %s709, 1

</llo_original>
